<compile_context>
chip_gen: v7x
topology: tpu7x:2x2x1
jax: 0.10.0
libtpu: 0.0.40
codegen_flags: <defaults>
</compile_context>

<pallas_src>
import functools

import jax
import jax.numpy as jnp
from jax.experimental import pallas as pl
from jax.experimental.pallas import tpu as pltpu


def lstm_model_kernel(x_ref, wih_ref, whh_ref, b_ref,
                      wheads_ref, b2_ref, bo_ref,
                      out_ref, y2_ref,
                      *, BP, T, H, O):
    # x_ref: (T*BP, D) time-major flattened, batch padded to BP sublanes.
    # Hoisted input projection + combined bias: one MXU call, M = T*BP rows.
    gx = (jnp.dot(x_ref[...], wih_ref[...], preferred_element_type=jnp.float32)
          + b_ref[...])                                            # (T*BP, 4H)

    h = jnp.zeros((BP, H), jnp.float32)
    c = jnp.zeros((BP, H), jnp.float32)
    csum = jnp.zeros((BP, H), jnp.float32)
    hs = []

    # Statically unrolled recurrence over T. Only h @ W_hh^T sits on the
    # serial h -> h dependency chain.
    # TODO(synk): hold W_hh resident in the MXU via matmul_push_rhs /
    # matmul_acc_lhs / matmul_pop (and fold the gx_t add into the v7x MRB
    # accumulator) once those explicit-MXU lowerings are verified on all
    # targets; jnp.dot is kept here for lowering robustness.
    for t in range(T):
        gates = gx[t * BP:(t + 1) * BP, :] + jnp.dot(
            h, whh_ref[...], preferred_element_type=jnp.float32)   # (BP, 4H)
        # 2 EUP pushes over the full (8, 128) gates vreg instead of 4 narrow
        # per-gate transcendentals; subsequent gate selection is lane slicing.
        sg = jax.nn.sigmoid(gates)
        tg = jnp.tanh(gates)
        i = sg[:, 0 * H:1 * H]
        f = sg[:, 1 * H:2 * H]
        g = tg[:, 2 * H:3 * H]
        o = sg[:, 3 * H:4 * H]
        c = f * c + i * g
        h = o * jnp.tanh(c)                                        # 3rd EUP push
        csum = csum + h
        hs.append(h)          # stays in vregs; no VMEM scratch round trip

    # Fused output heads: one matmul covers linear2(h_t) for every timestep
    # (first T*BP rows) and output(csum) (last BP rows).
    hist_all = jnp.concatenate(hs + [csum], axis=0)                # ((T+1)*BP, H)
    fused = jnp.dot(hist_all, wheads_ref[...],
                    preferred_element_type=jnp.float32)            # ((T+1)*BP, 2O)

    # Outputs are written exactly once. O=8 lanes -> small masked stores; per
    # review the absolute cost at this size is negligible.
    y2_ref[...] = fused[:T * BP, 0:O] + b2_ref[...]
    out_ref[...] = jax.nn.sigmoid(fused[T * BP:, O:2 * O] + bo_ref[...])


def lstm_model_forward(x, params):
    """x: (B, T, D) float32. Returns (sigmoid(output(sum_t h_t)), linear2(lstm_out))."""
    B, T, D = x.shape
    H = params["whh_t"].shape[0]
    O = params["wo_t"].shape[1]
    BP = max(8, -(-B // 8) * 8)          # pad batch to a full sublane group

    # Zero-pad batch and time-major flatten so each step's gate slice is a
    # contiguous, fully (8,128)-aligned row block. Padded rows only affect
    # themselves (batch rows are independent) and are sliced off below.
    x_pad = jnp.zeros((BP, T, D), jnp.float32).at[:B].set(x)
    x_flat = jnp.transpose(x_pad, (1, 0, 2)).reshape(T * BP, D)

    # Fused head weight: [linear2 | output] -> (H, 2O).
    w_heads = jnp.concatenate([params["w2_t"], params["wo_t"]], axis=1)

    def vmem_spec():
        return pl.BlockSpec(memory_space=pltpu.MemorySpace.VMEM)

    out_pad, y2_pad = pl.pallas_call(
        functools.partial(lstm_model_kernel, BP=BP, T=T, H=H, O=O),
        out_shape=(
            jax.ShapeDtypeStruct((BP, O), jnp.float32),         # sigmoid(output(csum))
            jax.ShapeDtypeStruct((T * BP, O), jnp.float32),     # linear2(lstm_out), time-major
        ),
        in_specs=[vmem_spec() for _ in range(7)],
        out_specs=(vmem_spec(), vmem_spec()),
        # Gridless on purpose: at this size a grid (or megacore sharding) only
        # adds per-step overhead; revisit once padded per-core batch >= 8 rows
        # of real work and gx approaches the scoped VMEM limit (v7x: 64 MiB).
    )(x_flat, params["wih_t"], params["whh_t"], params["b"],
      w_heads, params["b2"], params["bo"])

    out = out_pad[:B]
    y2 = jnp.transpose(y2_pad.reshape(T, BP, O)[:, :B], (1, 0, 2))   # batch-first
    return out, y2


def init_params(key, input_dim, hidden_dim, output_dim):
    ks = jax.random.split(key, 8)
    s_lstm = 1.0 / jnp.sqrt(hidden_dim)
    s_lin = 1.0 / jnp.sqrt(hidden_dim)
    # PyTorch shapes: weight_ih (4H, D), weight_hh (4H, H), biases (4H,)
    w_ih = jax.random.uniform(ks[0], (4 * hidden_dim, input_dim), jnp.float32, -s_lstm, s_lstm)
    w_hh = jax.random.uniform(ks[1], (4 * hidden_dim, hidden_dim), jnp.float32, -s_lstm, s_lstm)
    b_ih = jax.random.uniform(ks[2], (4 * hidden_dim,), jnp.float32, -s_lstm, s_lstm)
    b_hh = jax.random.uniform(ks[3], (4 * hidden_dim,), jnp.float32, -s_lstm, s_lstm)
    # nn.Linear: weight (out, in), bias (out,)
    w_out = jax.random.uniform(ks[4], (output_dim, hidden_dim), jnp.float32, -s_lin, s_lin)
    b_out = jax.random.uniform(ks[5], (output_dim,), jnp.float32, -s_lin, s_lin)
    w_lin2 = jax.random.uniform(ks[6], (output_dim, hidden_dim), jnp.float32, -s_lin, s_lin)
    b_lin2 = jax.random.uniform(ks[7], (output_dim,), jnp.float32, -s_lin, s_lin)
    return {
        "wih_t": w_ih.T,                              # (D, 4H)
        "whh_t": w_hh.T,                              # (H, 4H)
        "b": (b_ih + b_hh).reshape(1, 4 * hidden_dim),
        "wo_t": w_out.T,                              # (H, O)
        "bo": b_out.reshape(1, -1),
        "w2_t": w_lin2.T,                             # (H, O)
        "b2": b_lin2.reshape(1, -1),
    }


def reference_forward(x, params):
    """Pure-JAX reference of the PyTorch forward (unidirectional, sigmoid)."""
    B, T, D = x.shape
    H = params["whh_t"].shape[0]

    def step(carry, xt):
        h, c = carry
        gates = xt @ params["wih_t"] + h @ params["whh_t"] + params["b"]
        i = jax.nn.sigmoid(gates[:, 0 * H:1 * H])
        f = jax.nn.sigmoid(gates[:, 1 * H:2 * H])
        g = jnp.tanh(gates[:, 2 * H:3 * H])
        o = jax.nn.sigmoid(gates[:, 3 * H:4 * H])
        c = f * c + i * g
        h = o * jnp.tanh(c)
        return (h, c), h

    h0 = jnp.zeros((B, H), jnp.float32)
    c0 = jnp.zeros((B, H), jnp.float32)
    (_, _), hs = jax.lax.scan(step, (h0, c0), jnp.transpose(x, (1, 0, 2)))
    lstm_out = jnp.transpose(hs, (1, 0, 2))                       # (B, T, H)
    csum = jnp.sum(lstm_out, axis=1)                              # (B, H)
    out = jax.nn.sigmoid(csum @ params["wo_t"] + params["bo"])    # (B, O)
    y2 = lstm_out @ params["w2_t"] + params["b2"]                 # (B, T, O)
    return out, y2


if __name__ == "__main__":
    B, T = 2, 8
    input_dim, hidden_dim, output_dim = 4, 32, 8

    key = jax.random.PRNGKey(0)
    kx, kp = jax.random.split(key)
    x = jax.random.normal(kx, (B, T, input_dim), jnp.float32)
    params = init_params(kp, input_dim, hidden_dim, output_dim)

    out, y2 = lstm_model_forward(x, params)
    jax.block_until_ready((out, y2))

    ref_out, ref_y2 = reference_forward(x, params)
    assert out.shape == (B, output_dim)
    assert y2.shape == (B, T, output_dim)
    assert jnp.allclose(out, ref_out, atol=1e-5, rtol=1e-5)
    assert jnp.allclose(y2, ref_y2, atol=1e-5, rtol=1e-5)

    print("KERNEL_OK")
</pallas_src>

<mosaic_0001>
module attributes {stable_mosaic.version = 11 : i64} {
  func.func @lstm_model_kernel(%arg0: memref<64x4xf32, #tpu.memory_space<vmem>>, %arg1: memref<4x128xf32, #tpu.memory_space<vmem>>, %arg2: memref<32x128xf32, #tpu.memory_space<vmem>>, %arg3: memref<1x128xf32, #tpu.memory_space<vmem>>, %arg4: memref<32x16xf32, #tpu.memory_space<vmem>>, %arg5: memref<1x8xf32, #tpu.memory_space<vmem>>, %arg6: memref<1x8xf32, #tpu.memory_space<vmem>>, %arg7: memref<8x8xf32, #tpu.memory_space<vmem>>, %arg8: memref<64x8xf32, #tpu.memory_space<vmem>>) attributes {dimension_semantics = [], scalar_prefetch = 0 : i64, scratch_operands = 0 : i64, tpu.core_type = #tpu.core_type<tc>} {
    %c0 = arith.constant 0 : index
    %c0_0 = arith.constant 0 : index
    %0 = vector.load %arg0[%c0, %c0_0] : memref<64x4xf32, #tpu.memory_space<vmem>>, vector<64x4xf32>
    %c0_1 = arith.constant 0 : index
    %c0_2 = arith.constant 0 : index
    %1 = vector.load %arg1[%c0_1, %c0_2] : memref<4x128xf32, #tpu.memory_space<vmem>>, vector<4x128xf32>
    %cst = arith.constant dense<0.000000e+00> : vector<64x128xf32>
    %2 = tpu.matmul %0, %1, %cst {dimension_numbers = #tpu.dot_dimension_numbers<[1], [0], [0], [1], [0, 0, 1, 1], [], []>} : vector<64x4xf32>, vector<4x128xf32>, vector<64x128xf32> -> vector<64x128xf32>
    %c0_3 = arith.constant 0 : index
    %c0_4 = arith.constant 0 : index
    %3 = vector.load %arg3[%c0_3, %c0_4] : memref<1x128xf32, #tpu.memory_space<vmem>>, vector<1x128xf32>
    %4 = vector.broadcast %3 : vector<1x128xf32> to vector<64x128xf32>
    %5 = arith.addf %2, %4 : vector<64x128xf32>
    %cst_5 = arith.constant 0.000000e+00 : f32
    %6 = vector.broadcast %cst_5 : f32 to vector<8x32xf32>
    %cst_6 = arith.constant 0.000000e+00 : f32
    %7 = vector.broadcast %cst_6 : f32 to vector<8x32xf32>
    %cst_7 = arith.constant 0.000000e+00 : f32
    %8 = vector.broadcast %cst_7 : f32 to vector<8x32xf32>
    %9 = vector.extract_strided_slice %5 {offsets = [0, 0], sizes = [8, 128], strides = [1, 1]} : vector<64x128xf32> to vector<8x128xf32>
    %c0_8 = arith.constant 0 : index
    %c0_9 = arith.constant 0 : index
    %10 = vector.load %arg2[%c0_8, %c0_9] : memref<32x128xf32, #tpu.memory_space<vmem>>, vector<32x128xf32>
    %cst_10 = arith.constant dense<0.000000e+00> : vector<8x128xf32>
    %11 = tpu.matmul %6, %10, %cst_10 {dimension_numbers = #tpu.dot_dimension_numbers<[1], [0], [0], [1], [0, 0, 1, 1], [], []>} : vector<8x32xf32>, vector<32x128xf32>, vector<8x128xf32> -> vector<8x128xf32>
    %12 = arith.addf %9, %11 : vector<8x128xf32>
    %13 = arith.negf %12 : vector<8x128xf32>
    %14 = math.exp %13 : vector<8x128xf32>
    %cst_11 = arith.constant 1.000000e+00 : f32
    %15 = vector.broadcast %cst_11 : f32 to vector<8x128xf32>
    %16 = arith.addf %15, %14 : vector<8x128xf32>
    %17 = arith.divf %15, %16 : vector<8x128xf32>
    %18 = math.tanh %12 : vector<8x128xf32>
    %19 = vector.extract_strided_slice %17 {offsets = [0, 0], sizes = [8, 32], strides = [1, 1]} : vector<8x128xf32> to vector<8x32xf32>
    %20 = vector.extract_strided_slice %17 {offsets = [0, 32], sizes = [8, 32], strides = [1, 1]} : vector<8x128xf32> to vector<8x32xf32>
    %21 = vector.extract_strided_slice %18 {offsets = [0, 64], sizes = [8, 32], strides = [1, 1]} : vector<8x128xf32> to vector<8x32xf32>
    %22 = vector.extract_strided_slice %17 {offsets = [0, 96], sizes = [8, 32], strides = [1, 1]} : vector<8x128xf32> to vector<8x32xf32>
    %23 = arith.mulf %20, %7 : vector<8x32xf32>
    %24 = arith.mulf %19, %21 : vector<8x32xf32>
    %25 = arith.addf %23, %24 : vector<8x32xf32>
    %26 = math.tanh %25 : vector<8x32xf32>
    %27 = arith.mulf %22, %26 : vector<8x32xf32>
    %28 = arith.addf %8, %27 : vector<8x32xf32>
    %29 = vector.extract_strided_slice %5 {offsets = [8, 0], sizes = [8, 128], strides = [1, 1]} : vector<64x128xf32> to vector<8x128xf32>
    %c0_12 = arith.constant 0 : index
    %c0_13 = arith.constant 0 : index
    %30 = vector.load %arg2[%c0_12, %c0_13] : memref<32x128xf32, #tpu.memory_space<vmem>>, vector<32x128xf32>
    %cst_14 = arith.constant dense<0.000000e+00> : vector<8x128xf32>
    %31 = tpu.matmul %27, %30, %cst_14 {dimension_numbers = #tpu.dot_dimension_numbers<[1], [0], [0], [1], [0, 0, 1, 1], [], []>} : vector<8x32xf32>, vector<32x128xf32>, vector<8x128xf32> -> vector<8x128xf32>
    %32 = arith.addf %29, %31 : vector<8x128xf32>
    %33 = arith.negf %32 : vector<8x128xf32>
    %34 = math.exp %33 : vector<8x128xf32>
    %cst_15 = arith.constant 1.000000e+00 : f32
    %35 = vector.broadcast %cst_15 : f32 to vector<8x128xf32>
    %36 = arith.addf %35, %34 : vector<8x128xf32>
    %37 = arith.divf %35, %36 : vector<8x128xf32>
    %38 = math.tanh %32 : vector<8x128xf32>
    %39 = vector.extract_strided_slice %37 {offsets = [0, 0], sizes = [8, 32], strides = [1, 1]} : vector<8x128xf32> to vector<8x32xf32>
    %40 = vector.extract_strided_slice %37 {offsets = [0, 32], sizes = [8, 32], strides = [1, 1]} : vector<8x128xf32> to vector<8x32xf32>
    %41 = vector.extract_strided_slice %38 {offsets = [0, 64], sizes = [8, 32], strides = [1, 1]} : vector<8x128xf32> to vector<8x32xf32>
    %42 = vector.extract_strided_slice %37 {offsets = [0, 96], sizes = [8, 32], strides = [1, 1]} : vector<8x128xf32> to vector<8x32xf32>
    %43 = arith.mulf %40, %25 : vector<8x32xf32>
    %44 = arith.mulf %39, %41 : vector<8x32xf32>
    %45 = arith.addf %43, %44 : vector<8x32xf32>
    %46 = math.tanh %45 : vector<8x32xf32>
    %47 = arith.mulf %42, %46 : vector<8x32xf32>
    %48 = arith.addf %28, %47 : vector<8x32xf32>
    %49 = vector.extract_strided_slice %5 {offsets = [16, 0], sizes = [8, 128], strides = [1, 1]} : vector<64x128xf32> to vector<8x128xf32>
    %c0_16 = arith.constant 0 : index
    %c0_17 = arith.constant 0 : index
    %50 = vector.load %arg2[%c0_16, %c0_17] : memref<32x128xf32, #tpu.memory_space<vmem>>, vector<32x128xf32>
    %cst_18 = arith.constant dense<0.000000e+00> : vector<8x128xf32>
    %51 = tpu.matmul %47, %50, %cst_18 {dimension_numbers = #tpu.dot_dimension_numbers<[1], [0], [0], [1], [0, 0, 1, 1], [], []>} : vector<8x32xf32>, vector<32x128xf32>, vector<8x128xf32> -> vector<8x128xf32>
    %52 = arith.addf %49, %51 : vector<8x128xf32>
    %53 = arith.negf %52 : vector<8x128xf32>
    %54 = math.exp %53 : vector<8x128xf32>
    %cst_19 = arith.constant 1.000000e+00 : f32
    %55 = vector.broadcast %cst_19 : f32 to vector<8x128xf32>
    %56 = arith.addf %55, %54 : vector<8x128xf32>
    %57 = arith.divf %55, %56 : vector<8x128xf32>
    %58 = math.tanh %52 : vector<8x128xf32>
    %59 = vector.extract_strided_slice %57 {offsets = [0, 0], sizes = [8, 32], strides = [1, 1]} : vector<8x128xf32> to vector<8x32xf32>
    %60 = vector.extract_strided_slice %57 {offsets = [0, 32], sizes = [8, 32], strides = [1, 1]} : vector<8x128xf32> to vector<8x32xf32>
    %61 = vector.extract_strided_slice %58 {offsets = [0, 64], sizes = [8, 32], strides = [1, 1]} : vector<8x128xf32> to vector<8x32xf32>
    %62 = vector.extract_strided_slice %57 {offsets = [0, 96], sizes = [8, 32], strides = [1, 1]} : vector<8x128xf32> to vector<8x32xf32>
    %63 = arith.mulf %60, %45 : vector<8x32xf32>
    %64 = arith.mulf %59, %61 : vector<8x32xf32>
    %65 = arith.addf %63, %64 : vector<8x32xf32>
    %66 = math.tanh %65 : vector<8x32xf32>
    %67 = arith.mulf %62, %66 : vector<8x32xf32>
    %68 = arith.addf %48, %67 : vector<8x32xf32>
    %69 = vector.extract_strided_slice %5 {offsets = [24, 0], sizes = [8, 128], strides = [1, 1]} : vector<64x128xf32> to vector<8x128xf32>
    %c0_20 = arith.constant 0 : index
    %c0_21 = arith.constant 0 : index
    %70 = vector.load %arg2[%c0_20, %c0_21] : memref<32x128xf32, #tpu.memory_space<vmem>>, vector<32x128xf32>
    %cst_22 = arith.constant dense<0.000000e+00> : vector<8x128xf32>
    %71 = tpu.matmul %67, %70, %cst_22 {dimension_numbers = #tpu.dot_dimension_numbers<[1], [0], [0], [1], [0, 0, 1, 1], [], []>} : vector<8x32xf32>, vector<32x128xf32>, vector<8x128xf32> -> vector<8x128xf32>
    %72 = arith.addf %69, %71 : vector<8x128xf32>
    %73 = arith.negf %72 : vector<8x128xf32>
    %74 = math.exp %73 : vector<8x128xf32>
    %cst_23 = arith.constant 1.000000e+00 : f32
    %75 = vector.broadcast %cst_23 : f32 to vector<8x128xf32>
    %76 = arith.addf %75, %74 : vector<8x128xf32>
    %77 = arith.divf %75, %76 : vector<8x128xf32>
    %78 = math.tanh %72 : vector<8x128xf32>
    %79 = vector.extract_strided_slice %77 {offsets = [0, 0], sizes = [8, 32], strides = [1, 1]} : vector<8x128xf32> to vector<8x32xf32>
    %80 = vector.extract_strided_slice %77 {offsets = [0, 32], sizes = [8, 32], strides = [1, 1]} : vector<8x128xf32> to vector<8x32xf32>
    %81 = vector.extract_strided_slice %78 {offsets = [0, 64], sizes = [8, 32], strides = [1, 1]} : vector<8x128xf32> to vector<8x32xf32>
    %82 = vector.extract_strided_slice %77 {offsets = [0, 96], sizes = [8, 32], strides = [1, 1]} : vector<8x128xf32> to vector<8x32xf32>
    %83 = arith.mulf %80, %65 : vector<8x32xf32>
    %84 = arith.mulf %79, %81 : vector<8x32xf32>
    %85 = arith.addf %83, %84 : vector<8x32xf32>
    %86 = math.tanh %85 : vector<8x32xf32>
    %87 = arith.mulf %82, %86 : vector<8x32xf32>
    %88 = arith.addf %68, %87 : vector<8x32xf32>
    %89 = vector.extract_strided_slice %5 {offsets = [32, 0], sizes = [8, 128], strides = [1, 1]} : vector<64x128xf32> to vector<8x128xf32>
    %c0_24 = arith.constant 0 : index
    %c0_25 = arith.constant 0 : index
    %90 = vector.load %arg2[%c0_24, %c0_25] : memref<32x128xf32, #tpu.memory_space<vmem>>, vector<32x128xf32>
    %cst_26 = arith.constant dense<0.000000e+00> : vector<8x128xf32>
    %91 = tpu.matmul %87, %90, %cst_26 {dimension_numbers = #tpu.dot_dimension_numbers<[1], [0], [0], [1], [0, 0, 1, 1], [], []>} : vector<8x32xf32>, vector<32x128xf32>, vector<8x128xf32> -> vector<8x128xf32>
    %92 = arith.addf %89, %91 : vector<8x128xf32>
    %93 = arith.negf %92 : vector<8x128xf32>
    %94 = math.exp %93 : vector<8x128xf32>
    %cst_27 = arith.constant 1.000000e+00 : f32
    %95 = vector.broadcast %cst_27 : f32 to vector<8x128xf32>
    %96 = arith.addf %95, %94 : vector<8x128xf32>
    %97 = arith.divf %95, %96 : vector<8x128xf32>
    %98 = math.tanh %92 : vector<8x128xf32>
    %99 = vector.extract_strided_slice %97 {offsets = [0, 0], sizes = [8, 32], strides = [1, 1]} : vector<8x128xf32> to vector<8x32xf32>
    %100 = vector.extract_strided_slice %97 {offsets = [0, 32], sizes = [8, 32], strides = [1, 1]} : vector<8x128xf32> to vector<8x32xf32>
    %101 = vector.extract_strided_slice %98 {offsets = [0, 64], sizes = [8, 32], strides = [1, 1]} : vector<8x128xf32> to vector<8x32xf32>
    %102 = vector.extract_strided_slice %97 {offsets = [0, 96], sizes = [8, 32], strides = [1, 1]} : vector<8x128xf32> to vector<8x32xf32>
    %103 = arith.mulf %100, %85 : vector<8x32xf32>
    %104 = arith.mulf %99, %101 : vector<8x32xf32>
    %105 = arith.addf %103, %104 : vector<8x32xf32>
    %106 = math.tanh %105 : vector<8x32xf32>
    %107 = arith.mulf %102, %106 : vector<8x32xf32>
    %108 = arith.addf %88, %107 : vector<8x32xf32>
    %109 = vector.extract_strided_slice %5 {offsets = [40, 0], sizes = [8, 128], strides = [1, 1]} : vector<64x128xf32> to vector<8x128xf32>
    %c0_28 = arith.constant 0 : index
    %c0_29 = arith.constant 0 : index
    %110 = vector.load %arg2[%c0_28, %c0_29] : memref<32x128xf32, #tpu.memory_space<vmem>>, vector<32x128xf32>
    %cst_30 = arith.constant dense<0.000000e+00> : vector<8x128xf32>
    %111 = tpu.matmul %107, %110, %cst_30 {dimension_numbers = #tpu.dot_dimension_numbers<[1], [0], [0], [1], [0, 0, 1, 1], [], []>} : vector<8x32xf32>, vector<32x128xf32>, vector<8x128xf32> -> vector<8x128xf32>
    %112 = arith.addf %109, %111 : vector<8x128xf32>
    %113 = arith.negf %112 : vector<8x128xf32>
    %114 = math.exp %113 : vector<8x128xf32>
    %cst_31 = arith.constant 1.000000e+00 : f32
    %115 = vector.broadcast %cst_31 : f32 to vector<8x128xf32>
    %116 = arith.addf %115, %114 : vector<8x128xf32>
    %117 = arith.divf %115, %116 : vector<8x128xf32>
    %118 = math.tanh %112 : vector<8x128xf32>
    %119 = vector.extract_strided_slice %117 {offsets = [0, 0], sizes = [8, 32], strides = [1, 1]} : vector<8x128xf32> to vector<8x32xf32>
    %120 = vector.extract_strided_slice %117 {offsets = [0, 32], sizes = [8, 32], strides = [1, 1]} : vector<8x128xf32> to vector<8x32xf32>
    %121 = vector.extract_strided_slice %118 {offsets = [0, 64], sizes = [8, 32], strides = [1, 1]} : vector<8x128xf32> to vector<8x32xf32>
    %122 = vector.extract_strided_slice %117 {offsets = [0, 96], sizes = [8, 32], strides = [1, 1]} : vector<8x128xf32> to vector<8x32xf32>
    %123 = arith.mulf %120, %105 : vector<8x32xf32>
    %124 = arith.mulf %119, %121 : vector<8x32xf32>
    %125 = arith.addf %123, %124 : vector<8x32xf32>
    %126 = math.tanh %125 : vector<8x32xf32>
    %127 = arith.mulf %122, %126 : vector<8x32xf32>
    %128 = arith.addf %108, %127 : vector<8x32xf32>
    %129 = vector.extract_strided_slice %5 {offsets = [48, 0], sizes = [8, 128], strides = [1, 1]} : vector<64x128xf32> to vector<8x128xf32>
    %c0_32 = arith.constant 0 : index
    %c0_33 = arith.constant 0 : index
    %130 = vector.load %arg2[%c0_32, %c0_33] : memref<32x128xf32, #tpu.memory_space<vmem>>, vector<32x128xf32>
    %cst_34 = arith.constant dense<0.000000e+00> : vector<8x128xf32>
    %131 = tpu.matmul %127, %130, %cst_34 {dimension_numbers = #tpu.dot_dimension_numbers<[1], [0], [0], [1], [0, 0, 1, 1], [], []>} : vector<8x32xf32>, vector<32x128xf32>, vector<8x128xf32> -> vector<8x128xf32>
    %132 = arith.addf %129, %131 : vector<8x128xf32>
    %133 = arith.negf %132 : vector<8x128xf32>
    %134 = math.exp %133 : vector<8x128xf32>
    %cst_35 = arith.constant 1.000000e+00 : f32
    %135 = vector.broadcast %cst_35 : f32 to vector<8x128xf32>
    %136 = arith.addf %135, %134 : vector<8x128xf32>
    %137 = arith.divf %135, %136 : vector<8x128xf32>
    %138 = math.tanh %132 : vector<8x128xf32>
    %139 = vector.extract_strided_slice %137 {offsets = [0, 0], sizes = [8, 32], strides = [1, 1]} : vector<8x128xf32> to vector<8x32xf32>
    %140 = vector.extract_strided_slice %137 {offsets = [0, 32], sizes = [8, 32], strides = [1, 1]} : vector<8x128xf32> to vector<8x32xf32>
    %141 = vector.extract_strided_slice %138 {offsets = [0, 64], sizes = [8, 32], strides = [1, 1]} : vector<8x128xf32> to vector<8x32xf32>
    %142 = vector.extract_strided_slice %137 {offsets = [0, 96], sizes = [8, 32], strides = [1, 1]} : vector<8x128xf32> to vector<8x32xf32>
    %143 = arith.mulf %140, %125 : vector<8x32xf32>
    %144 = arith.mulf %139, %141 : vector<8x32xf32>
    %145 = arith.addf %143, %144 : vector<8x32xf32>
    %146 = math.tanh %145 : vector<8x32xf32>
    %147 = arith.mulf %142, %146 : vector<8x32xf32>
    %148 = arith.addf %128, %147 : vector<8x32xf32>
    %149 = vector.extract_strided_slice %5 {offsets = [56, 0], sizes = [8, 128], strides = [1, 1]} : vector<64x128xf32> to vector<8x128xf32>
    %c0_36 = arith.constant 0 : index
    %c0_37 = arith.constant 0 : index
    %150 = vector.load %arg2[%c0_36, %c0_37] : memref<32x128xf32, #tpu.memory_space<vmem>>, vector<32x128xf32>
    %cst_38 = arith.constant dense<0.000000e+00> : vector<8x128xf32>
    %151 = tpu.matmul %147, %150, %cst_38 {dimension_numbers = #tpu.dot_dimension_numbers<[1], [0], [0], [1], [0, 0, 1, 1], [], []>} : vector<8x32xf32>, vector<32x128xf32>, vector<8x128xf32> -> vector<8x128xf32>
    %152 = arith.addf %149, %151 : vector<8x128xf32>
    %153 = arith.negf %152 : vector<8x128xf32>
    %154 = math.exp %153 : vector<8x128xf32>
    %cst_39 = arith.constant 1.000000e+00 : f32
    %155 = vector.broadcast %cst_39 : f32 to vector<8x128xf32>
    %156 = arith.addf %155, %154 : vector<8x128xf32>
    %157 = arith.divf %155, %156 : vector<8x128xf32>
    %158 = math.tanh %152 : vector<8x128xf32>
    %159 = vector.extract_strided_slice %157 {offsets = [0, 0], sizes = [8, 32], strides = [1, 1]} : vector<8x128xf32> to vector<8x32xf32>
    %160 = vector.extract_strided_slice %157 {offsets = [0, 32], sizes = [8, 32], strides = [1, 1]} : vector<8x128xf32> to vector<8x32xf32>
    %161 = vector.extract_strided_slice %158 {offsets = [0, 64], sizes = [8, 32], strides = [1, 1]} : vector<8x128xf32> to vector<8x32xf32>
    %162 = vector.extract_strided_slice %157 {offsets = [0, 96], sizes = [8, 32], strides = [1, 1]} : vector<8x128xf32> to vector<8x32xf32>
    %163 = arith.mulf %160, %145 : vector<8x32xf32>
    %164 = arith.mulf %159, %161 : vector<8x32xf32>
    %165 = arith.addf %163, %164 : vector<8x32xf32>
    %166 = math.tanh %165 : vector<8x32xf32>
    %167 = arith.mulf %162, %166 : vector<8x32xf32>
    %168 = arith.addf %148, %167 : vector<8x32xf32>
    %169 = tpu.concatenate %27, %47, %67, %87, %107, %127, %147, %167, %168 in 0 : vector<8x32xf32>, vector<8x32xf32>, vector<8x32xf32>, vector<8x32xf32>, vector<8x32xf32>, vector<8x32xf32>, vector<8x32xf32>, vector<8x32xf32>, vector<8x32xf32> -> vector<72x32xf32>
    %c0_40 = arith.constant 0 : index
    %c0_41 = arith.constant 0 : index
    %170 = vector.load %arg4[%c0_40, %c0_41] : memref<32x16xf32, #tpu.memory_space<vmem>>, vector<32x16xf32>
    %cst_42 = arith.constant dense<0.000000e+00> : vector<72x16xf32>
    %171 = tpu.matmul %169, %170, %cst_42 {dimension_numbers = #tpu.dot_dimension_numbers<[1], [0], [0], [1], [0, 0, 1, 1], [], []>} : vector<72x32xf32>, vector<32x16xf32>, vector<72x16xf32> -> vector<72x16xf32>
    %172 = vector.extract_strided_slice %171 {offsets = [0, 0], sizes = [64, 8], strides = [1, 1]} : vector<72x16xf32> to vector<64x8xf32>
    %c0_43 = arith.constant 0 : index
    %c0_44 = arith.constant 0 : index
    %173 = vector.load %arg5[%c0_43, %c0_44] : memref<1x8xf32, #tpu.memory_space<vmem>>, vector<1x8xf32>
    %174 = vector.broadcast %173 : vector<1x8xf32> to vector<64x8xf32>
    %175 = arith.addf %172, %174 : vector<64x8xf32>
    %c0_45 = arith.constant 0 : index
    %c0_46 = arith.constant 0 : index
    %176 = vector.load %arg8[%c0_45, %c0_46] : memref<64x8xf32, #tpu.memory_space<vmem>>, vector<64x8xf32>
    tpu.vector_store %arg8[%c0_45, %c0_46], %175 {strides = array<i32>} : memref<64x8xf32, #tpu.memory_space<vmem>>, vector<64x8xf32>,
    %177 = vector.extract_strided_slice %171 {offsets = [64, 8], sizes = [8, 8], strides = [1, 1]} : vector<72x16xf32> to vector<8x8xf32>
    %c0_47 = arith.constant 0 : index
    %c0_48 = arith.constant 0 : index
    %178 = vector.load %arg6[%c0_47, %c0_48] : memref<1x8xf32, #tpu.memory_space<vmem>>, vector<1x8xf32>
    %179 = vector.broadcast %178 : vector<1x8xf32> to vector<8x8xf32>
    %180 = arith.addf %177, %179 : vector<8x8xf32>
    %181 = arith.negf %180 : vector<8x8xf32>
    %182 = math.exp %181 : vector<8x8xf32>
    %cst_49 = arith.constant 1.000000e+00 : f32
    %183 = vector.broadcast %cst_49 : f32 to vector<8x8xf32>
    %184 = arith.addf %183, %182 : vector<8x8xf32>
    %185 = arith.divf %183, %184 : vector<8x8xf32>
    %c0_50 = arith.constant 0 : index
    %c0_51 = arith.constant 0 : index
    %186 = vector.load %arg7[%c0_50, %c0_51] : memref<8x8xf32, #tpu.memory_space<vmem>>, vector<8x8xf32>
    tpu.vector_store %arg7[%c0_50, %c0_51], %185 {strides = array<i32>} : memref<8x8xf32, #tpu.memory_space<vmem>>, vector<8x8xf32>,
    return
  }
}

</mosaic_0001>

<llo_original>
// kernel: tpu_custom_call.1
$region0: #{tpu_custom_call.1}
  #allocation0 [shape = 'u32[]', space=smem, size = 0x4, offset = 0x4, fixed_abs, tag = 'smem constant byte address 0x4 - core index']
  #allocation1 [shape = 'u32[144,128]{1,0:T(1,128)}', space=vmem, size = 0x12000, scoped, tag = 'internal scratch']
  %s0 = inlined_call_operand.vmem [shape: f32[64,4], index: 0, kind: input, shape index: {}]
  %s1 = inlined_call_operand.vmem [shape: f32[4,128], index: 1, kind: input, shape index: {}]
  %s2 = inlined_call_operand.vmem [shape: f32[32,128], index: 2, kind: input, shape index: {}]
  %s3 = inlined_call_operand.vmem [shape: f32[1,128], index: 3, kind: input, shape index: {}]
  %s4 = inlined_call_operand.vmem [shape: f32[32,16], index: 4, kind: input, shape index: {}]
  %s5 = inlined_call_operand.vmem [shape: f32[1,8], index: 5, kind: input, shape index: {}]
  %s6 = inlined_call_operand.vmem [shape: f32[1,8], index: 6, kind: input, shape index: {}]
  %s7 = inlined_call_operand.hbm [shape: f32[8,8], index: 7, kind: output, shape index: {0}]
  %s8 = inlined_call_operand.vmem [shape: f32[64,8], index: 8, kind: output, shape index: {1}]
  %9 = xla_tuple %s7, %s8
  %s10 = sld [smem:[#allocation0]]
  $region46: #{tpu_custom_call.1} parent=0
    _
  %s12 = ssub.s32 1, %s10
  %s13 = scalar_select 0, %s12, %s10
  $region1: #{tpu_custom_call.1} parent=0
    #allocation2 [shape = 'u8[4096]{0}', space=vmem, size = 0x1000, scoped, tag = 'output window, operand 0, single buffered']
    #allocation3 [shape = 's32[1]{0}', space=sflag, size = 0x4, scoped, tag = 'scoped memory for tpu_custom_call.1']
    %14 = vsyncpa [#allocation3], 0
    // Predicated region
    $region2: #{tpu_custom_call.1} parent=1 // pred_check
      _
    $region3: #{tpu_custom_call.1} parent=1 // pred_check_branch
      %16 = sbr.rel (0) target = $region5
    $region4: #{tpu_custom_call.1} parent=1 // pred_region
      _
    $region5: #{tpu_custom_call.1} parent=1 // pred_fallthru
      _
    // Predicated region
    $region6: #{tpu_custom_call.1} parent=1 // pred_check
      _
    $region7: #{tpu_custom_call.1} parent=1 // pred_check_branch
      %18 = sbr.rel (0) target = $region9
    $region8: #{tpu_custom_call.1} parent=1 // pred_region
      _
    $region9: #{tpu_custom_call.1} parent=1 // pred_fallthru
      _
    // Predicated region
    $region10: #{tpu_custom_call.1} parent=1 // pred_check
      _
    $region11: #{tpu_custom_call.1} parent=1 // pred_check_branch
      %20 = sbr.rel (0) target = $region13
    $region12: #{tpu_custom_call.1} parent=1 // pred_region
      _
    $region13: #{tpu_custom_call.1} parent=1 // pred_fallthru
      _
    // Predicated region
    $region14: #{tpu_custom_call.1} parent=1 // pred_check
      _
    $region15: #{tpu_custom_call.1} parent=1 // pred_check_branch
      %22 = sbr.rel (0) target = $region17
    $region16: #{tpu_custom_call.1} parent=1 // pred_region
      _
    $region17: #{tpu_custom_call.1} parent=1 // pred_fallthru
      _
    // Predicated region
    $region18: #{tpu_custom_call.1} parent=1 // pred_check
      _
    $region19: #{tpu_custom_call.1} parent=1 // pred_check_branch
      %24 = sbr.rel (0) target = $region21
    $region20: #{tpu_custom_call.1} parent=1 // pred_region
      _
    $region21: #{tpu_custom_call.1} parent=1 // pred_fallthru
      _
    // Predicated region
    $region22: #{tpu_custom_call.1} parent=1 // pred_check
      _
    $region23: #{tpu_custom_call.1} parent=1 // pred_check_branch
      %26 = sbr.rel (0) target = $region25
    $region24: #{tpu_custom_call.1} parent=1 // pred_region
      _
    $region25: #{tpu_custom_call.1} parent=1 // pred_fallthru
      _
    // Predicated region
    $region26: #{tpu_custom_call.1} parent=1 // pred_check
      _
    $region27: #{tpu_custom_call.1} parent=1 // pred_check_branch
      %28 = sbr.rel (0) target = $region29
    $region28: #{tpu_custom_call.1} parent=1 // pred_region
      _
    $region29: #{tpu_custom_call.1} parent=1 // pred_fallthru
      _
    %v29 = vld [vmem:[%s0] sm:$0xff]
    %v30 = vld [vmem:[%s0 + $0x8] sm:$0xff]
    %v31 = vld [vmem:[%s0 + $0x10] sm:$0xff]
    %v32 = vld [vmem:[%s0 + $0x18] sm:$0xff]
    %v33 = vld [vmem:[%s0 + $0x20] sm:$0xff]
    %v34 = vld [vmem:[%s0 + $0x28] sm:$0xff]
    %v35 = vld [vmem:[%s0 + $0x30] sm:$0xff]
    %v36 = vld [vmem:[%s0 + $0x38] sm:$0xff]
    %v37 = vld [vmem:[%s1] sm:$0xf]
    %v38 = vld [vmem:[%s3] sm:$0x1]
    %v40 = vlaneseq
    %v41 = vshrl.u32 %v40, 7
    %v42 = vsub.s32 0, %v41
    %v43 = vrot.slane %v38, %v42
    %vm45 = vcmask 31744
    %v47 = vsel %vm45, %v29, 0
    %v50 = vsel %vm45, %v30, 0
    %v53 = vsel %vm45, %v31, 0
    %v56 = vsel %vm45, %v32, 0
    %v59 = vsel %vm45, %v33, 0
    %v62 = vsel %vm45, %v34, 0
    %v65 = vsel %vm45, %v35, 0
    %v68 = vsel %vm45, %v36, 0
    %vm70 = vcmask 1043456
    %v72 = vsel %vm70, %v37, 0
    %74 = vmatprep.subr.mxu0 0.0
    %75 = vmatpush1.msra.mxu0 %v72
    %76 = vmatprep.subr.mxu0 0.0
    %77 = vmatpush1.msra.mxu0 0.0
    %78 = vmatprep.subr.mxu0 0.0
    %79 = vmatpush1.msra.mxu0 0.0
    %80 = vmatprep.subr.mxu0 0.0
    %81 = vmatpush1.msra.mxu0 0.0
    %82 = vmatprep.subr.mxu0 0.0
    %83 = vmatpush1.msra.mxu0 0.0
    %84 = vmatprep.subr.mxu0 0.0
    %85 = vmatpush1.msra.mxu0 0.0
    %86 = vmatprep.subr.mxu0 0.0
    %87 = vmatpush1.msra.mxu0 0.0
    %88 = vmatprep.subr.mxu0 0.0
    %89 = vmatpush1.msra.mxu0 0.0
    %90 = vmatprep.subr.mxu0 0.0
    %91 = vmatpush1.msra.mxu0 0.0
    %92 = vmatprep.subr.mxu0 0.0
    %93 = vmatpush1.msra.mxu0 0.0
    %94 = vmatprep.subr.mxu0 0.0
    %95 = vmatpush1.msra.mxu0 0.0
    %96 = vmatprep.subr.mxu0 0.0
    %97 = vmatpush1.msra.mxu0 0.0
    %98 = vmatprep.subr.mxu0 0.0
    %99 = vmatpush1.msra.mxu0 0.0
    %100 = vmatprep.subr.mxu0 0.0
    %101 = vmatpush1.msra.mxu0 0.0
    %102 = vmatprep.subr.mxu0 0.0
    %103 = vmatpush1.msra.mxu0 0.0
    %104 = vmatprep.subr.mxu0 0.0
    %105 = vmatpush1.msra.mxu0 0.0
    %106 = vmatprep.subr.mxu0 0.0
    %107 = vmatpush1.msra.mxu0 0.0
    %108 = vmatprep.subr.mxu0 0.0
    %109 = vmatpush1.msra.mxu0 0.0
    %110 = vmatprep.subr.mxu0 0.0
    %111 = vmatpush1.msra.mxu0 0.0
    %112 = vmatprep.subr.mxu0 0.0
    %113 = vmatpush1.msra.mxu0 0.0
    %114 = vmatprep.subr.mxu0 0.0
    %115 = vmatpush1.msra.mxu0 0.0
    %116 = vmatprep.subr.mxu0 0.0
    %117 = vmatpush1.msra.mxu0 0.0
    %118 = vmatprep.subr.mxu0 0.0
    %119 = vmatpush1.msra.mxu0 0.0
    %120 = vmatprep.subr.mxu0 0.0
    %121 = vmatpush1.msra.mxu0 0.0
    %122 = vmatprep.subr.mxu0 0.0
    %123 = vmatpush1.msra.mxu0 0.0
    %124 = vmatprep.subr.mxu0 0.0
    %125 = vmatpush1.msra.mxu0 0.0
    %126 = vmatprep.subr.mxu0 0.0
    %127 = vmatpush1.msra.mxu0 0.0
    %128 = vmatprep.subr.mxu0 0.0
    %129 = vmatpush1.msra.mxu0 0.0
    %130 = vmatprep.subr.mxu0 0.0
    %131 = vmatpush1.msra.mxu0 0.0
    %132 = vmatprep.subr.mxu0 0.0
    %133 = vmatpush1.msra.mxu0 0.0
    %134 = vmatprep.subr.mxu0 0.0
    %135 = vmatpush1.msra.mxu0 0.0
    %136 = vmatprep.subr.mxu0 0.0
    %137 = vmatpush1.msra.mxu0 0.0
    %138 = vmatprep.mubr.f32.mxu0 0.0
    %139 = vmatmul.mubr.f32.gmra.mrb[0].mxu0 %v47
    %v140 = vpop.f32.mrb[0].mxu0
    %v141 = vadd.f32 %v43, %v140
    %v142 = vpop.f32.mrb[0].mxu0
    %143 = vmatprep.mubr.f32.mxu0 0.0
    %144 = vmatmul.mubr.f32.gmra.mrb[0].mxu0 %v50
    %v145 = vpop.f32.mrb[0].mxu0
    %v146 = vadd.f32 %v43, %v145
    %v147 = vpop.f32.mrb[0].mxu0
    %148 = vmatprep.mubr.f32.mxu0 0.0
    %149 = vmatmul.mubr.f32.gmra.mrb[0].mxu0 %v53
    %v150 = vpop.f32.mrb[0].mxu0
    %v151 = vadd.f32 %v43, %v150
    %v152 = vpop.f32.mrb[0].mxu0
    %153 = vmatprep.mubr.f32.mxu0 0.0
    %154 = vmatmul.mubr.f32.gmra.mrb[0].mxu0 %v56
    %v155 = vpop.f32.mrb[0].mxu0
    %v156 = vadd.f32 %v43, %v155
    %v157 = vpop.f32.mrb[0].mxu0
    %158 = vmatprep.mubr.f32.mxu0 0.0
    %159 = vmatmul.mubr.f32.gmra.mrb[0].mxu0 %v59
    %v160 = vpop.f32.mrb[0].mxu0
    %v161 = vadd.f32 %v43, %v160
    %v162 = vpop.f32.mrb[0].mxu0
    %163 = vmatprep.mubr.f32.mxu0 0.0
    %164 = vmatmul.mubr.f32.gmra.mrb[0].mxu0 %v62
    %v165 = vpop.f32.mrb[0].mxu0
    %v166 = vadd.f32 %v43, %v165
    %v167 = vpop.f32.mrb[0].mxu0
    %168 = vmatprep.mubr.f32.mxu0 0.0
    %169 = vmatmul.mubr.f32.gmra.mrb[0].mxu0 %v65
    %v170 = vpop.f32.mrb[0].mxu0
    %v171 = vadd.f32 %v43, %v170
    %v172 = vpop.f32.mrb[0].mxu0
    %173 = vmatprep.mubr.f32.mxu0 0.0
    %174 = vmatmul.mubr.f32.gmra.mrb[0].mxu0 %v68
    %v175 = vpop.f32.mrb[0].mxu0
    %v176 = vadd.f32 %v43, %v175
    %v177 = vpop.f32.mrb[0].mxu0
    %178 = vdwg.mxu0
    %v179 = vld [vmem:[%s2] sm:$0xff]
    %v180 = vld [vmem:[%s2 + $0x8] sm:$0xff]
    %v181 = vld [vmem:[%s2 + $0x10] sm:$0xff]
    %v182 = vld [vmem:[%s2 + $0x18] sm:$0xff]
    %vm183 = vcmask 261120
    %v185 = vsel %vm183, 0.0, 0
    %187 = vmatprep.subr.mxu0 0.0
    %188 = vmatpush1.msra.mxu0 %v179
    %189 = vmatprep.subr.mxu0 0.0
    %190 = vmatpush1.msra.mxu0 %v180
    %191 = vmatprep.subr.mxu0 0.0
    %192 = vmatpush1.msra.mxu0 %v181
    %193 = vmatprep.subr.mxu0 0.0
    %194 = vmatpush1.msra.mxu0 %v182
    %195 = vmatprep.subr.mxu0 0.0
    %196 = vmatpush1.msra.mxu0 0.0
    %197 = vmatprep.subr.mxu0 0.0
    %198 = vmatpush1.msra.mxu0 0.0
    %199 = vmatprep.subr.mxu0 0.0
    %200 = vmatpush1.msra.mxu0 0.0
    %201 = vmatprep.subr.mxu0 0.0
    %202 = vmatpush1.msra.mxu0 0.0
    %203 = vmatprep.subr.mxu0 0.0
    %204 = vmatpush1.msra.mxu0 0.0
    %205 = vmatprep.subr.mxu0 0.0
    %206 = vmatpush1.msra.mxu0 0.0
    %207 = vmatprep.subr.mxu0 0.0
    %208 = vmatpush1.msra.mxu0 0.0
    %209 = vmatprep.subr.mxu0 0.0
    %210 = vmatpush1.msra.mxu0 0.0
    %211 = vmatprep.subr.mxu0 0.0
    %212 = vmatpush1.msra.mxu0 0.0
    %213 = vmatprep.subr.mxu0 0.0
    %214 = vmatpush1.msra.mxu0 0.0
    %215 = vmatprep.subr.mxu0 0.0
    %216 = vmatpush1.msra.mxu0 0.0
    %217 = vmatprep.subr.mxu0 0.0
    %218 = vmatpush1.msra.mxu0 0.0
    %219 = vmatprep.subr.mxu0 0.0
    %220 = vmatpush1.msra.mxu0 0.0
    %221 = vmatprep.subr.mxu0 0.0
    %222 = vmatpush1.msra.mxu0 0.0
    %223 = vmatprep.subr.mxu0 0.0
    %224 = vmatpush1.msra.mxu0 0.0
    %225 = vmatprep.subr.mxu0 0.0
    %226 = vmatpush1.msra.mxu0 0.0
    %227 = vmatprep.subr.mxu0 0.0
    %228 = vmatpush1.msra.mxu0 0.0
    %229 = vmatprep.subr.mxu0 0.0
    %230 = vmatpush1.msra.mxu0 0.0
    %231 = vmatprep.subr.mxu0 0.0
    %232 = vmatpush1.msra.mxu0 0.0
    %233 = vmatprep.subr.mxu0 0.0
    %234 = vmatpush1.msra.mxu0 0.0
    %235 = vmatprep.subr.mxu0 0.0
    %236 = vmatpush1.msra.mxu0 0.0
    %237 = vmatprep.subr.mxu0 0.0
    %238 = vmatpush1.msra.mxu0 0.0
    %239 = vmatprep.subr.mxu0 0.0
    %240 = vmatpush1.msra.mxu0 0.0
    %241 = vmatprep.subr.mxu0 0.0
    %242 = vmatpush1.msra.mxu0 0.0
    %243 = vmatprep.subr.mxu0 0.0
    %244 = vmatpush1.msra.mxu0 0.0
    %245 = vmatprep.subr.mxu0 0.0
    %246 = vmatpush1.msra.mxu0 0.0
    %247 = vmatprep.subr.mxu0 0.0
    %248 = vmatpush1.msra.mxu0 0.0
    %249 = vmatprep.subr.mxu0 0.0
    %250 = vmatpush1.msra.mxu0 0.0
    %251 = vmatprep.mubr.f32.mxu0 0.0
    %252 = vmatmul.mubr.f32.gmra.mrb[0].mxu0 %v185
    %v253 = vpop.f32.mrb[0].mxu0
    %v254 = vadd.f32 0.0, %v253
    %v255 = vpop.f32.mrb[0].mxu0
    %256 = vdwg.mxu0
    %v257 = vadd.f32 %v141, %v254
    %v258 = vxor.u32 %v257, 2147483648
    %v259 = vmul.f32 %v258, 1.442695
    %v260 = vpow.pop %v259
    %v261 = vadd.f32 %v260, 1.0
    %v262 = vrcp.pop %v261
    %v263 = vmul.f32 1.0, %v262
    %v264 = vtanh.pop %v257
    %v265 = vmul.f32 %v263, 0.0
    %267 = vrot.lane.b32.xlu0 %v264, 64
    %v268 = vpop.permute.xlu0 %267
    %v270 = vmul.f32 %v263, %v268
    %272 = vrot.lane.b32.xlu0 %v270, 32
    %v273 = vpop.permute.xlu0 %272
    %v275 = vadd.f32 %v265, %v273
    %v276 = vtanh.pop %v275
    %278 = vrot.lane.b32.xlu0 %v276, 64
    %v279 = vpop.permute.xlu0 %278
    %v281 = vmul.f32 %v263, %v279
    %v282 = vadd.f32 %v281, 0.0
    %284 = vrot.lane.b32.xlu0 %v281, 32
    %v285 = vpop.permute.xlu0 %284
    %v286 = vsel %vm183, %v285, 0
    %288 = vmatprep.subr.mxu0 0.0
    %289 = vmatpush1.msra.mxu0 %v179
    %290 = vmatprep.subr.mxu0 0.0
    %291 = vmatpush1.msra.mxu0 %v180
    %292 = vmatprep.subr.mxu0 0.0
    %293 = vmatpush1.msra.mxu0 %v181
    %294 = vmatprep.subr.mxu0 0.0
    %295 = vmatpush1.msra.mxu0 %v182
    %296 = vmatprep.subr.mxu0 0.0
    %297 = vmatpush1.msra.mxu0 0.0
    %298 = vmatprep.subr.mxu0 0.0
    %299 = vmatpush1.msra.mxu0 0.0
    %300 = vmatprep.subr.mxu0 0.0
    %301 = vmatpush1.msra.mxu0 0.0
    %302 = vmatprep.subr.mxu0 0.0
    %303 = vmatpush1.msra.mxu0 0.0
    %304 = vmatprep.subr.mxu0 0.0
    %305 = vmatpush1.msra.mxu0 0.0
    %306 = vmatprep.subr.mxu0 0.0
    %307 = vmatpush1.msra.mxu0 0.0
    %308 = vmatprep.subr.mxu0 0.0
    %309 = vmatpush1.msra.mxu0 0.0
    %310 = vmatprep.subr.mxu0 0.0
    %311 = vmatpush1.msra.mxu0 0.0
    %312 = vmatprep.subr.mxu0 0.0
    %313 = vmatpush1.msra.mxu0 0.0
    %314 = vmatprep.subr.mxu0 0.0
    %315 = vmatpush1.msra.mxu0 0.0
    %316 = vmatprep.subr.mxu0 0.0
    %317 = vmatpush1.msra.mxu0 0.0
    %318 = vmatprep.subr.mxu0 0.0
    %319 = vmatpush1.msra.mxu0 0.0
    %320 = vmatprep.subr.mxu0 0.0
    %321 = vmatpush1.msra.mxu0 0.0
    %322 = vmatprep.subr.mxu0 0.0
    %323 = vmatpush1.msra.mxu0 0.0
    %324 = vmatprep.subr.mxu0 0.0
    %325 = vmatpush1.msra.mxu0 0.0
    %326 = vmatprep.subr.mxu0 0.0
    %327 = vmatpush1.msra.mxu0 0.0
    %328 = vmatprep.subr.mxu0 0.0
    %329 = vmatpush1.msra.mxu0 0.0
    %330 = vmatprep.subr.mxu0 0.0
    %331 = vmatpush1.msra.mxu0 0.0
    %332 = vmatprep.subr.mxu0 0.0
    %333 = vmatpush1.msra.mxu0 0.0
    %334 = vmatprep.subr.mxu0 0.0
    %335 = vmatpush1.msra.mxu0 0.0
    %336 = vmatprep.subr.mxu0 0.0
    %337 = vmatpush1.msra.mxu0 0.0
    %338 = vmatprep.subr.mxu0 0.0
    %339 = vmatpush1.msra.mxu0 0.0
    %340 = vmatprep.subr.mxu0 0.0
    %341 = vmatpush1.msra.mxu0 0.0
    %342 = vmatprep.subr.mxu0 0.0
    %343 = vmatpush1.msra.mxu0 0.0
    %344 = vmatprep.subr.mxu0 0.0
    %345 = vmatpush1.msra.mxu0 0.0
    %346 = vmatprep.subr.mxu0 0.0
    %347 = vmatpush1.msra.mxu0 0.0
    %348 = vmatprep.subr.mxu0 0.0
    %349 = vmatpush1.msra.mxu0 0.0
    %350 = vmatprep.subr.mxu0 0.0
    %351 = vmatpush1.msra.mxu0 0.0
    %352 = vmatprep.mubr.f32.mxu0 0.0
    %353 = vmatmul.mubr.f32.gmra.mrb[0].mxu0 %v286
    %v354 = vpop.f32.mrb[0].mxu0
    %v355 = vadd.f32 0.0, %v354
    %v356 = vpop.f32.mrb[0].mxu0
    %357 = vdwg.mxu0
    %v358 = vadd.f32 %v146, %v355
    %v359 = vxor.u32 %v358, 2147483648
    %v360 = vmul.f32 %v359, 1.442695
    %v361 = vpow.pop %v360
    %v362 = vadd.f32 %v361, 1.0
    %v363 = vrcp.pop %v362
    %v364 = vmul.f32 1.0, %v363
    %v365 = vtanh.pop %v358
    %v366 = vmul.f32 %v364, %v275
    %368 = vrot.lane.b32.xlu0 %v365, 64
    %v369 = vpop.permute.xlu0 %368
    %v371 = vmul.f32 %v364, %v369
    %373 = vrot.lane.b32.xlu0 %v371, 32
    %v374 = vpop.permute.xlu0 %373
    %v376 = vadd.f32 %v366, %v374
    %v377 = vtanh.pop %v376
    %379 = vrot.lane.b32.xlu0 %v377, 64
    %v380 = vpop.permute.xlu0 %379
    %v382 = vmul.f32 %v364, %v380
    %v383 = vadd.f32 %v282, %v382
    %385 = vrot.lane.b32.xlu0 %v382, 32
    %v386 = vpop.permute.xlu0 %385
    %v387 = vsel %vm183, %v386, 0
    %389 = vmatprep.subr.mxu0 0.0
    %390 = vmatpush1.msra.mxu0 %v179
    %391 = vmatprep.subr.mxu0 0.0
    %392 = vmatpush1.msra.mxu0 %v180
    %393 = vmatprep.subr.mxu0 0.0
    %394 = vmatpush1.msra.mxu0 %v181
    %395 = vmatprep.subr.mxu0 0.0
    %396 = vmatpush1.msra.mxu0 %v182
    %397 = vmatprep.subr.mxu0 0.0
    %398 = vmatpush1.msra.mxu0 0.0
    %399 = vmatprep.subr.mxu0 0.0
    %400 = vmatpush1.msra.mxu0 0.0
    %401 = vmatprep.subr.mxu0 0.0
    %402 = vmatpush1.msra.mxu0 0.0
    %403 = vmatprep.subr.mxu0 0.0
    %404 = vmatpush1.msra.mxu0 0.0
    %405 = vmatprep.subr.mxu0 0.0
    %406 = vmatpush1.msra.mxu0 0.0
    %407 = vmatprep.subr.mxu0 0.0
    %408 = vmatpush1.msra.mxu0 0.0
    %409 = vmatprep.subr.mxu0 0.0
    %410 = vmatpush1.msra.mxu0 0.0
    %411 = vmatprep.subr.mxu0 0.0
    %412 = vmatpush1.msra.mxu0 0.0
    %413 = vmatprep.subr.mxu0 0.0
    %414 = vmatpush1.msra.mxu0 0.0
    %415 = vmatprep.subr.mxu0 0.0
    %416 = vmatpush1.msra.mxu0 0.0
    %417 = vmatprep.subr.mxu0 0.0
    %418 = vmatpush1.msra.mxu0 0.0
    %419 = vmatprep.subr.mxu0 0.0
    %420 = vmatpush1.msra.mxu0 0.0
    %421 = vmatprep.subr.mxu0 0.0
    %422 = vmatpush1.msra.mxu0 0.0
    %423 = vmatprep.subr.mxu0 0.0
    %424 = vmatpush1.msra.mxu0 0.0
    %425 = vmatprep.subr.mxu0 0.0
    %426 = vmatpush1.msra.mxu0 0.0
    %427 = vmatprep.subr.mxu0 0.0
    %428 = vmatpush1.msra.mxu0 0.0
    %429 = vmatprep.subr.mxu0 0.0
    %430 = vmatpush1.msra.mxu0 0.0
    %431 = vmatprep.subr.mxu0 0.0
    %432 = vmatpush1.msra.mxu0 0.0
    %433 = vmatprep.subr.mxu0 0.0
    %434 = vmatpush1.msra.mxu0 0.0
    %435 = vmatprep.subr.mxu0 0.0
    %436 = vmatpush1.msra.mxu0 0.0
    %437 = vmatprep.subr.mxu0 0.0
    %438 = vmatpush1.msra.mxu0 0.0
    %439 = vmatprep.subr.mxu0 0.0
    %440 = vmatpush1.msra.mxu0 0.0
    %441 = vmatprep.subr.mxu0 0.0
    %442 = vmatpush1.msra.mxu0 0.0
    %443 = vmatprep.subr.mxu0 0.0
    %444 = vmatpush1.msra.mxu0 0.0
    %445 = vmatprep.subr.mxu0 0.0
    %446 = vmatpush1.msra.mxu0 0.0
    %447 = vmatprep.subr.mxu0 0.0
    %448 = vmatpush1.msra.mxu0 0.0
    %449 = vmatprep.subr.mxu0 0.0
    %450 = vmatpush1.msra.mxu0 0.0
    %451 = vmatprep.subr.mxu0 0.0
    %452 = vmatpush1.msra.mxu0 0.0
    %453 = vmatprep.mubr.f32.mxu0 0.0
    %454 = vmatmul.mubr.f32.gmra.mrb[0].mxu0 %v387
    %v455 = vpop.f32.mrb[0].mxu0
    %v456 = vadd.f32 0.0, %v455
    %v457 = vpop.f32.mrb[0].mxu0
    %458 = vdwg.mxu0
    %v459 = vadd.f32 %v151, %v456
    %v460 = vxor.u32 %v459, 2147483648
    %v461 = vmul.f32 %v460, 1.442695
    %v462 = vpow.pop %v461
    %v463 = vadd.f32 %v462, 1.0
    %v464 = vrcp.pop %v463
    %v465 = vmul.f32 1.0, %v464
    %v466 = vtanh.pop %v459
    %v467 = vmul.f32 %v465, %v376
    %469 = vrot.lane.b32.xlu0 %v466, 64
    %v470 = vpop.permute.xlu0 %469
    %v472 = vmul.f32 %v465, %v470
    %474 = vrot.lane.b32.xlu0 %v472, 32
    %v475 = vpop.permute.xlu0 %474
    %v477 = vadd.f32 %v467, %v475
    %v478 = vtanh.pop %v477
    %480 = vrot.lane.b32.xlu0 %v478, 64
    %v481 = vpop.permute.xlu0 %480
    %v483 = vmul.f32 %v465, %v481
    %v484 = vadd.f32 %v383, %v483
    %486 = vrot.lane.b32.xlu0 %v483, 32
    %v487 = vpop.permute.xlu0 %486
    %v488 = vsel %vm183, %v487, 0
    %490 = vmatprep.subr.mxu0 0.0
    %491 = vmatpush1.msra.mxu0 %v179
    %492 = vmatprep.subr.mxu0 0.0
    %493 = vmatpush1.msra.mxu0 %v180
    %494 = vmatprep.subr.mxu0 0.0
    %495 = vmatpush1.msra.mxu0 %v181
    %496 = vmatprep.subr.mxu0 0.0
    %497 = vmatpush1.msra.mxu0 %v182
    %498 = vmatprep.subr.mxu0 0.0
    %499 = vmatpush1.msra.mxu0 0.0
    %500 = vmatprep.subr.mxu0 0.0
    %501 = vmatpush1.msra.mxu0 0.0
    %502 = vmatprep.subr.mxu0 0.0
    %503 = vmatpush1.msra.mxu0 0.0
    %504 = vmatprep.subr.mxu0 0.0
    %505 = vmatpush1.msra.mxu0 0.0
    %506 = vmatprep.subr.mxu0 0.0
    %507 = vmatpush1.msra.mxu0 0.0
    %508 = vmatprep.subr.mxu0 0.0
    %509 = vmatpush1.msra.mxu0 0.0
    %510 = vmatprep.subr.mxu0 0.0
    %511 = vmatpush1.msra.mxu0 0.0
    %512 = vmatprep.subr.mxu0 0.0
    %513 = vmatpush1.msra.mxu0 0.0
    %514 = vmatprep.subr.mxu0 0.0
    %515 = vmatpush1.msra.mxu0 0.0
    %516 = vmatprep.subr.mxu0 0.0
    %517 = vmatpush1.msra.mxu0 0.0
    %518 = vmatprep.subr.mxu0 0.0
    %519 = vmatpush1.msra.mxu0 0.0
    %520 = vmatprep.subr.mxu0 0.0
    %521 = vmatpush1.msra.mxu0 0.0
    %522 = vmatprep.subr.mxu0 0.0
    %523 = vmatpush1.msra.mxu0 0.0
    %524 = vmatprep.subr.mxu0 0.0
    %525 = vmatpush1.msra.mxu0 0.0
    %526 = vmatprep.subr.mxu0 0.0
    %527 = vmatpush1.msra.mxu0 0.0
    %528 = vmatprep.subr.mxu0 0.0
    %529 = vmatpush1.msra.mxu0 0.0
    %530 = vmatprep.subr.mxu0 0.0
    %531 = vmatpush1.msra.mxu0 0.0
    %532 = vmatprep.subr.mxu0 0.0
    %533 = vmatpush1.msra.mxu0 0.0
    %534 = vmatprep.subr.mxu0 0.0
    %535 = vmatpush1.msra.mxu0 0.0
    %536 = vmatprep.subr.mxu0 0.0
    %537 = vmatpush1.msra.mxu0 0.0
    %538 = vmatprep.subr.mxu0 0.0
    %539 = vmatpush1.msra.mxu0 0.0
    %540 = vmatprep.subr.mxu0 0.0
    %541 = vmatpush1.msra.mxu0 0.0
    %542 = vmatprep.subr.mxu0 0.0
    %543 = vmatpush1.msra.mxu0 0.0
    %544 = vmatprep.subr.mxu0 0.0
    %545 = vmatpush1.msra.mxu0 0.0
    %546 = vmatprep.subr.mxu0 0.0
    %547 = vmatpush1.msra.mxu0 0.0
    %548 = vmatprep.subr.mxu0 0.0
    %549 = vmatpush1.msra.mxu0 0.0
    %550 = vmatprep.subr.mxu0 0.0
    %551 = vmatpush1.msra.mxu0 0.0
    %552 = vmatprep.subr.mxu0 0.0
    %553 = vmatpush1.msra.mxu0 0.0
    %554 = vmatprep.mubr.f32.mxu0 0.0
    %555 = vmatmul.mubr.f32.gmra.mrb[0].mxu0 %v488
    %v556 = vpop.f32.mrb[0].mxu0
    %v557 = vadd.f32 0.0, %v556
    %v558 = vpop.f32.mrb[0].mxu0
    %559 = vdwg.mxu0
    %v560 = vadd.f32 %v156, %v557
    %v561 = vxor.u32 %v560, 2147483648
    %v562 = vmul.f32 %v561, 1.442695
    %v563 = vpow.pop %v562
    %v564 = vadd.f32 %v563, 1.0
    %v565 = vrcp.pop %v564
    %v566 = vmul.f32 1.0, %v565
    %v567 = vtanh.pop %v560
    %v568 = vmul.f32 %v566, %v477
    %570 = vrot.lane.b32.xlu0 %v567, 64
    %v571 = vpop.permute.xlu0 %570
    %v573 = vmul.f32 %v566, %v571
    %575 = vrot.lane.b32.xlu0 %v573, 32
    %v576 = vpop.permute.xlu0 %575
    %v578 = vadd.f32 %v568, %v576
    %v579 = vtanh.pop %v578
    %581 = vrot.lane.b32.xlu0 %v579, 64
    %v582 = vpop.permute.xlu0 %581
    %v584 = vmul.f32 %v566, %v582
    %v585 = vadd.f32 %v484, %v584
    %587 = vrot.lane.b32.xlu0 %v584, 32
    %v588 = vpop.permute.xlu0 %587
    %v589 = vsel %vm183, %v588, 0
    %591 = vmatprep.subr.mxu0 0.0
    %592 = vmatpush1.msra.mxu0 %v179
    %593 = vmatprep.subr.mxu0 0.0
    %594 = vmatpush1.msra.mxu0 %v180
    %595 = vmatprep.subr.mxu0 0.0
    %596 = vmatpush1.msra.mxu0 %v181
    %597 = vmatprep.subr.mxu0 0.0
    %598 = vmatpush1.msra.mxu0 %v182
    %599 = vmatprep.subr.mxu0 0.0
    %600 = vmatpush1.msra.mxu0 0.0
    %601 = vmatprep.subr.mxu0 0.0
    %602 = vmatpush1.msra.mxu0 0.0
    %603 = vmatprep.subr.mxu0 0.0
    %604 = vmatpush1.msra.mxu0 0.0
    %605 = vmatprep.subr.mxu0 0.0
    %606 = vmatpush1.msra.mxu0 0.0
    %607 = vmatprep.subr.mxu0 0.0
    %608 = vmatpush1.msra.mxu0 0.0
    %609 = vmatprep.subr.mxu0 0.0
    %610 = vmatpush1.msra.mxu0 0.0
    %611 = vmatprep.subr.mxu0 0.0
    %612 = vmatpush1.msra.mxu0 0.0
    %613 = vmatprep.subr.mxu0 0.0
    %614 = vmatpush1.msra.mxu0 0.0
    %615 = vmatprep.subr.mxu0 0.0
    %616 = vmatpush1.msra.mxu0 0.0
    %617 = vmatprep.subr.mxu0 0.0
    %618 = vmatpush1.msra.mxu0 0.0
    %619 = vmatprep.subr.mxu0 0.0
    %620 = vmatpush1.msra.mxu0 0.0
    %621 = vmatprep.subr.mxu0 0.0
    %622 = vmatpush1.msra.mxu0 0.0
    %623 = vmatprep.subr.mxu0 0.0
    %624 = vmatpush1.msra.mxu0 0.0
    %625 = vmatprep.subr.mxu0 0.0
    %626 = vmatpush1.msra.mxu0 0.0
    %627 = vmatprep.subr.mxu0 0.0
    %628 = vmatpush1.msra.mxu0 0.0
    %629 = vmatprep.subr.mxu0 0.0
    %630 = vmatpush1.msra.mxu0 0.0
    %631 = vmatprep.subr.mxu0 0.0
    %632 = vmatpush1.msra.mxu0 0.0
    %633 = vmatprep.subr.mxu0 0.0
    %634 = vmatpush1.msra.mxu0 0.0
    %635 = vmatprep.subr.mxu0 0.0
    %636 = vmatpush1.msra.mxu0 0.0
    %637 = vmatprep.subr.mxu0 0.0
    %638 = vmatpush1.msra.mxu0 0.0
    %639 = vmatprep.subr.mxu0 0.0
    %640 = vmatpush1.msra.mxu0 0.0
    %641 = vmatprep.subr.mxu0 0.0
    %642 = vmatpush1.msra.mxu0 0.0
    %643 = vmatprep.subr.mxu0 0.0
    %644 = vmatpush1.msra.mxu0 0.0
    %645 = vmatprep.subr.mxu0 0.0
    %646 = vmatpush1.msra.mxu0 0.0
    %647 = vmatprep.subr.mxu0 0.0
    %648 = vmatpush1.msra.mxu0 0.0
    %649 = vmatprep.subr.mxu0 0.0
    %650 = vmatpush1.msra.mxu0 0.0
    %651 = vmatprep.subr.mxu0 0.0
    %652 = vmatpush1.msra.mxu0 0.0
    %653 = vmatprep.subr.mxu0 0.0
    %654 = vmatpush1.msra.mxu0 0.0
    %655 = vmatprep.mubr.f32.mxu0 0.0
    %656 = vmatmul.mubr.f32.gmra.mrb[0].mxu0 %v589
    %v657 = vpop.f32.mrb[0].mxu0
    %v658 = vadd.f32 0.0, %v657
    %v659 = vpop.f32.mrb[0].mxu0
    %660 = vdwg.mxu0
    %v661 = vadd.f32 %v161, %v658
    %v662 = vxor.u32 %v661, 2147483648
    %v663 = vmul.f32 %v662, 1.442695
    %v664 = vpow.pop %v663
    %v665 = vadd.f32 %v664, 1.0
    %v666 = vrcp.pop %v665
    %v667 = vmul.f32 1.0, %v666
    %v668 = vtanh.pop %v661
    %v669 = vmul.f32 %v667, %v578
    %671 = vrot.lane.b32.xlu0 %v668, 64
    %v672 = vpop.permute.xlu0 %671
    %v674 = vmul.f32 %v667, %v672
    %676 = vrot.lane.b32.xlu0 %v674, 32
    %v677 = vpop.permute.xlu0 %676
    %v679 = vadd.f32 %v669, %v677
    %v680 = vtanh.pop %v679
    %682 = vrot.lane.b32.xlu0 %v680, 64
    %v683 = vpop.permute.xlu0 %682
    %v685 = vmul.f32 %v667, %v683
    %v686 = vadd.f32 %v585, %v685
    %688 = vrot.lane.b32.xlu0 %v685, 32
    %v689 = vpop.permute.xlu0 %688
    %v690 = vsel %vm183, %v689, 0
    %692 = vmatprep.subr.mxu0 0.0
    %693 = vmatpush1.msra.mxu0 %v179
    %694 = vmatprep.subr.mxu0 0.0
    %695 = vmatpush1.msra.mxu0 %v180
    %696 = vmatprep.subr.mxu0 0.0
    %697 = vmatpush1.msra.mxu0 %v181
    %698 = vmatprep.subr.mxu0 0.0
    %699 = vmatpush1.msra.mxu0 %v182
    %700 = vmatprep.subr.mxu0 0.0
    %701 = vmatpush1.msra.mxu0 0.0
    %702 = vmatprep.subr.mxu0 0.0
    %703 = vmatpush1.msra.mxu0 0.0
    %704 = vmatprep.subr.mxu0 0.0
    %705 = vmatpush1.msra.mxu0 0.0
    %706 = vmatprep.subr.mxu0 0.0
    %707 = vmatpush1.msra.mxu0 0.0
    %708 = vmatprep.subr.mxu0 0.0
    %709 = vmatpush1.msra.mxu0 0.0
    %710 = vmatprep.subr.mxu0 0.0
    %711 = vmatpush1.msra.mxu0 0.0
    %712 = vmatprep.subr.mxu0 0.0
    %713 = vmatpush1.msra.mxu0 0.0
    %714 = vmatprep.subr.mxu0 0.0
    %715 = vmatpush1.msra.mxu0 0.0
    %716 = vmatprep.subr.mxu0 0.0
    %717 = vmatpush1.msra.mxu0 0.0
    %718 = vmatprep.subr.mxu0 0.0
    %719 = vmatpush1.msra.mxu0 0.0
    %720 = vmatprep.subr.mxu0 0.0
    %721 = vmatpush1.msra.mxu0 0.0
    %722 = vmatprep.subr.mxu0 0.0
    %723 = vmatpush1.msra.mxu0 0.0
    %724 = vmatprep.subr.mxu0 0.0
    %725 = vmatpush1.msra.mxu0 0.0
    %726 = vmatprep.subr.mxu0 0.0
    %727 = vmatpush1.msra.mxu0 0.0
    %728 = vmatprep.subr.mxu0 0.0
    %729 = vmatpush1.msra.mxu0 0.0
    %730 = vmatprep.subr.mxu0 0.0
    %731 = vmatpush1.msra.mxu0 0.0
    %732 = vmatprep.subr.mxu0 0.0
    %733 = vmatpush1.msra.mxu0 0.0
    %734 = vmatprep.subr.mxu0 0.0
    %735 = vmatpush1.msra.mxu0 0.0
    %736 = vmatprep.subr.mxu0 0.0
    %737 = vmatpush1.msra.mxu0 0.0
    %738 = vmatprep.subr.mxu0 0.0
    %739 = vmatpush1.msra.mxu0 0.0
    %740 = vmatprep.subr.mxu0 0.0
    %741 = vmatpush1.msra.mxu0 0.0
    %742 = vmatprep.subr.mxu0 0.0
    %743 = vmatpush1.msra.mxu0 0.0
    %744 = vmatprep.subr.mxu0 0.0
    %745 = vmatpush1.msra.mxu0 0.0
    %746 = vmatprep.subr.mxu0 0.0
    %747 = vmatpush1.msra.mxu0 0.0
    %748 = vmatprep.subr.mxu0 0.0
    %749 = vmatpush1.msra.mxu0 0.0
    %750 = vmatprep.subr.mxu0 0.0
    %751 = vmatpush1.msra.mxu0 0.0
    %752 = vmatprep.subr.mxu0 0.0
    %753 = vmatpush1.msra.mxu0 0.0
    %754 = vmatprep.subr.mxu0 0.0
    %755 = vmatpush1.msra.mxu0 0.0
    %756 = vmatprep.mubr.f32.mxu0 0.0
    %757 = vmatmul.mubr.f32.gmra.mrb[0].mxu0 %v690
    %v758 = vpop.f32.mrb[0].mxu0
    %v759 = vadd.f32 0.0, %v758
    %v760 = vpop.f32.mrb[0].mxu0
    %761 = vdwg.mxu0
    %v762 = vadd.f32 %v166, %v759
    %v763 = vxor.u32 %v762, 2147483648
    %v764 = vmul.f32 %v763, 1.442695
    %v765 = vpow.pop %v764
    %v766 = vadd.f32 %v765, 1.0
    %v767 = vrcp.pop %v766
    %v768 = vmul.f32 1.0, %v767
    %v769 = vtanh.pop %v762
    %v770 = vmul.f32 %v768, %v679
    %772 = vrot.lane.b32.xlu0 %v769, 64
    %v773 = vpop.permute.xlu0 %772
    %v775 = vmul.f32 %v768, %v773
    %777 = vrot.lane.b32.xlu0 %v775, 32
    %v778 = vpop.permute.xlu0 %777
    %v780 = vadd.f32 %v770, %v778
    %v781 = vtanh.pop %v780
    %783 = vrot.lane.b32.xlu0 %v781, 64
    %v784 = vpop.permute.xlu0 %783
    %v786 = vmul.f32 %v768, %v784
    %v787 = vadd.f32 %v686, %v786
    %789 = vrot.lane.b32.xlu0 %v786, 32
    %v790 = vpop.permute.xlu0 %789
    %v791 = vsel %vm183, %v790, 0
    %793 = vmatprep.subr.mxu0 0.0
    %794 = vmatpush1.msra.mxu0 %v179
    %795 = vmatprep.subr.mxu0 0.0
    %796 = vmatpush1.msra.mxu0 %v180
    %797 = vmatprep.subr.mxu0 0.0
    %798 = vmatpush1.msra.mxu0 %v181
    %799 = vmatprep.subr.mxu0 0.0
    %800 = vmatpush1.msra.mxu0 %v182
    %801 = vmatprep.subr.mxu0 0.0
    %802 = vmatpush1.msra.mxu0 0.0
    %803 = vmatprep.subr.mxu0 0.0
    %804 = vmatpush1.msra.mxu0 0.0
    %805 = vmatprep.subr.mxu0 0.0
    %806 = vmatpush1.msra.mxu0 0.0
    %807 = vmatprep.subr.mxu0 0.0
    %808 = vmatpush1.msra.mxu0 0.0
    %809 = vmatprep.subr.mxu0 0.0
    %810 = vmatpush1.msra.mxu0 0.0
    %811 = vmatprep.subr.mxu0 0.0
    %812 = vmatpush1.msra.mxu0 0.0
    %813 = vmatprep.subr.mxu0 0.0
    %814 = vmatpush1.msra.mxu0 0.0
    %815 = vmatprep.subr.mxu0 0.0
    %816 = vmatpush1.msra.mxu0 0.0
    %817 = vmatprep.subr.mxu0 0.0
    %818 = vmatpush1.msra.mxu0 0.0
    %819 = vmatprep.subr.mxu0 0.0
    %820 = vmatpush1.msra.mxu0 0.0
    %821 = vmatprep.subr.mxu0 0.0
    %822 = vmatpush1.msra.mxu0 0.0
    %823 = vmatprep.subr.mxu0 0.0
    %824 = vmatpush1.msra.mxu0 0.0
    %825 = vmatprep.subr.mxu0 0.0
    %826 = vmatpush1.msra.mxu0 0.0
    %827 = vmatprep.subr.mxu0 0.0
    %828 = vmatpush1.msra.mxu0 0.0
    %829 = vmatprep.subr.mxu0 0.0
    %830 = vmatpush1.msra.mxu0 0.0
    %831 = vmatprep.subr.mxu0 0.0
    %832 = vmatpush1.msra.mxu0 0.0
    %833 = vmatprep.subr.mxu0 0.0
    %834 = vmatpush1.msra.mxu0 0.0
    %835 = vmatprep.subr.mxu0 0.0
    %836 = vmatpush1.msra.mxu0 0.0
    %837 = vmatprep.subr.mxu0 0.0
    %838 = vmatpush1.msra.mxu0 0.0
    %839 = vmatprep.subr.mxu0 0.0
    %840 = vmatpush1.msra.mxu0 0.0
    %841 = vmatprep.subr.mxu0 0.0
    %842 = vmatpush1.msra.mxu0 0.0
    %843 = vmatprep.subr.mxu0 0.0
    %844 = vmatpush1.msra.mxu0 0.0
    %845 = vmatprep.subr.mxu0 0.0
    %846 = vmatpush1.msra.mxu0 0.0
    %847 = vmatprep.subr.mxu0 0.0
    %848 = vmatpush1.msra.mxu0 0.0
    %849 = vmatprep.subr.mxu0 0.0
    %850 = vmatpush1.msra.mxu0 0.0
    %851 = vmatprep.subr.mxu0 0.0
    %852 = vmatpush1.msra.mxu0 0.0
    %853 = vmatprep.subr.mxu0 0.0
    %854 = vmatpush1.msra.mxu0 0.0
    %855 = vmatprep.subr.mxu0 0.0
    %856 = vmatpush1.msra.mxu0 0.0
    %857 = vmatprep.mubr.f32.mxu0 0.0
    %858 = vmatmul.mubr.f32.gmra.mrb[0].mxu0 %v791
    %v859 = vpop.f32.mrb[0].mxu0
    %v860 = vadd.f32 0.0, %v859
    %v861 = vpop.f32.mrb[0].mxu0
    %862 = vdwg.mxu0
    %v863 = vadd.f32 %v171, %v860
    %v864 = vxor.u32 %v863, 2147483648
    %v865 = vmul.f32 %v864, 1.442695
    %v866 = vpow.pop %v865
    %v867 = vadd.f32 %v866, 1.0
    %v868 = vrcp.pop %v867
    %v869 = vmul.f32 1.0, %v868
    %v870 = vtanh.pop %v863
    %v871 = vmul.f32 %v869, %v780
    %873 = vrot.lane.b32.xlu0 %v870, 64
    %v874 = vpop.permute.xlu0 %873
    %v876 = vmul.f32 %v869, %v874
    %878 = vrot.lane.b32.xlu0 %v876, 32
    %v879 = vpop.permute.xlu0 %878
    %v881 = vadd.f32 %v871, %v879
    %v882 = vtanh.pop %v881
    %884 = vrot.lane.b32.xlu0 %v882, 64
    %v885 = vpop.permute.xlu0 %884
    %v887 = vmul.f32 %v869, %v885
    %v888 = vadd.f32 %v787, %v887
    %890 = vrot.lane.b32.xlu0 %v887, 32
    %v891 = vpop.permute.xlu0 %890
    %v892 = vsel %vm183, %v891, 0
    %894 = vmatprep.subr.mxu0 0.0
    %895 = vmatpush1.msra.mxu0 %v179
    %896 = vmatprep.subr.mxu0 0.0
    %897 = vmatpush1.msra.mxu0 %v180
    %898 = vmatprep.subr.mxu0 0.0
    %899 = vmatpush1.msra.mxu0 %v181
    %900 = vmatprep.subr.mxu0 0.0
    %901 = vmatpush1.msra.mxu0 %v182
    %902 = vmatprep.subr.mxu0 0.0
    %903 = vmatpush1.msra.mxu0 0.0
    %904 = vmatprep.subr.mxu0 0.0
    %905 = vmatpush1.msra.mxu0 0.0
    %906 = vmatprep.subr.mxu0 0.0
    %907 = vmatpush1.msra.mxu0 0.0
    %908 = vmatprep.subr.mxu0 0.0
    %909 = vmatpush1.msra.mxu0 0.0
    %910 = vmatprep.subr.mxu0 0.0
    %911 = vmatpush1.msra.mxu0 0.0
    %912 = vmatprep.subr.mxu0 0.0
    %913 = vmatpush1.msra.mxu0 0.0
    %914 = vmatprep.subr.mxu0 0.0
    %915 = vmatpush1.msra.mxu0 0.0
    %916 = vmatprep.subr.mxu0 0.0
    %917 = vmatpush1.msra.mxu0 0.0
    %918 = vmatprep.subr.mxu0 0.0
    %919 = vmatpush1.msra.mxu0 0.0
    %920 = vmatprep.subr.mxu0 0.0
    %921 = vmatpush1.msra.mxu0 0.0
    %922 = vmatprep.subr.mxu0 0.0
    %923 = vmatpush1.msra.mxu0 0.0
    %924 = vmatprep.subr.mxu0 0.0
    %925 = vmatpush1.msra.mxu0 0.0
    %926 = vmatprep.subr.mxu0 0.0
    %927 = vmatpush1.msra.mxu0 0.0
    %928 = vmatprep.subr.mxu0 0.0
    %929 = vmatpush1.msra.mxu0 0.0
    %930 = vmatprep.subr.mxu0 0.0
    %931 = vmatpush1.msra.mxu0 0.0
    %932 = vmatprep.subr.mxu0 0.0
    %933 = vmatpush1.msra.mxu0 0.0
    %934 = vmatprep.subr.mxu0 0.0
    %935 = vmatpush1.msra.mxu0 0.0
    %936 = vmatprep.subr.mxu0 0.0
    %937 = vmatpush1.msra.mxu0 0.0
    %938 = vmatprep.subr.mxu0 0.0
    %939 = vmatpush1.msra.mxu0 0.0
    %940 = vmatprep.subr.mxu0 0.0
    %941 = vmatpush1.msra.mxu0 0.0
    %942 = vmatprep.subr.mxu0 0.0
    %943 = vmatpush1.msra.mxu0 0.0
    %944 = vmatprep.subr.mxu0 0.0
    %945 = vmatpush1.msra.mxu0 0.0
    %946 = vmatprep.subr.mxu0 0.0
    %947 = vmatpush1.msra.mxu0 0.0
    %948 = vmatprep.subr.mxu0 0.0
    %949 = vmatpush1.msra.mxu0 0.0
    %950 = vmatprep.subr.mxu0 0.0
    %951 = vmatpush1.msra.mxu0 0.0
    %952 = vmatprep.subr.mxu0 0.0
    %953 = vmatpush1.msra.mxu0 0.0
    %954 = vmatprep.subr.mxu0 0.0
    %955 = vmatpush1.msra.mxu0 0.0
    %956 = vmatprep.subr.mxu0 0.0
    %957 = vmatpush1.msra.mxu0 0.0
    %958 = vmatprep.mubr.f32.mxu0 0.0
    %959 = vmatmul.mubr.f32.gmra.mrb[0].mxu0 %v892
    %v960 = vpop.f32.mrb[0].mxu0
    %v961 = vadd.f32 0.0, %v960
    %v962 = vpop.f32.mrb[0].mxu0
    %963 = vdwg.mxu0
    %v964 = vadd.f32 %v176, %v961
    %v965 = vxor.u32 %v964, 2147483648
    %v966 = vmul.f32 %v965, 1.442695
    %v967 = vpow.pop %v966
    %v968 = vadd.f32 %v967, 1.0
    %v969 = vrcp.pop %v968
    %v970 = vmul.f32 1.0, %v969
    %v971 = vtanh.pop %v964
    %v972 = vmul.f32 %v970, %v881
    %974 = vrot.lane.b32.xlu0 %v971, 64
    %v975 = vpop.permute.xlu0 %974
    %v977 = vmul.f32 %v970, %v975
    %979 = vrot.lane.b32.xlu0 %v977, 32
    %v980 = vpop.permute.xlu0 %979
    %v982 = vadd.f32 %v972, %v980
    %v983 = vtanh.pop %v982
    %985 = vrot.lane.b32.xlu0 %v983, 64
    %v986 = vpop.permute.xlu0 %985
    %v988 = vmul.f32 %v970, %v986
    %v989 = vadd.f32 %v888, %v988
    %v990 = vld [vmem:[%s4] sm:$0xff]
    %v991 = vld [vmem:[%s4 + $0x8] sm:$0xff]
    %v992 = vld [vmem:[%s4 + $0x10] sm:$0xff]
    %v993 = vld [vmem:[%s4 + $0x18] sm:$0xff]
    %996 = vrot.lane.b32.xlu0 %v988, 32
    %v997 = vpop.permute.xlu0 %996
    %998 = vrot.lane.b32.xlu0 %v989, 32
    %v999 = vpop.permute.xlu0 %998
    %v1000 = vsel %vm183, %v997, 0
    %v1002 = vsel %vm183, %v999, 0
    %1004 = vmatprep.subr.mxu0 0.0
    %1005 = vmatpush1.msra.mxu0 %v990
    %1006 = vmatprep.subr.mxu0 0.0
    %1007 = vmatpush1.msra.mxu0 %v991
    %1008 = vmatprep.subr.mxu0 0.0
    %1009 = vmatpush1.msra.mxu0 %v992
    %1010 = vmatprep.subr.mxu0 0.0
    %1011 = vmatpush1.msra.mxu0 %v993
    %1012 = vmatprep.subr.mxu0 0.0
    %1013 = vmatpush1.msra.mxu0 0.0
    %1014 = vmatprep.subr.mxu0 0.0
    %1015 = vmatpush1.msra.mxu0 0.0
    %1016 = vmatprep.subr.mxu0 0.0
    %1017 = vmatpush1.msra.mxu0 0.0
    %1018 = vmatprep.subr.mxu0 0.0
    %1019 = vmatpush1.msra.mxu0 0.0
    %1020 = vmatprep.subr.mxu0 0.0
    %1021 = vmatpush1.msra.mxu0 0.0
    %1022 = vmatprep.subr.mxu0 0.0
    %1023 = vmatpush1.msra.mxu0 0.0
    %1024 = vmatprep.subr.mxu0 0.0
    %1025 = vmatpush1.msra.mxu0 0.0
    %1026 = vmatprep.subr.mxu0 0.0
    %1027 = vmatpush1.msra.mxu0 0.0
    %1028 = vmatprep.subr.mxu0 0.0
    %1029 = vmatpush1.msra.mxu0 0.0
    %1030 = vmatprep.subr.mxu0 0.0
    %1031 = vmatpush1.msra.mxu0 0.0
    %1032 = vmatprep.subr.mxu0 0.0
    %1033 = vmatpush1.msra.mxu0 0.0
    %1034 = vmatprep.subr.mxu0 0.0
    %1035 = vmatpush1.msra.mxu0 0.0
    %1036 = vmatprep.subr.mxu0 0.0
    %1037 = vmatpush1.msra.mxu0 0.0
    %1038 = vmatprep.subr.mxu0 0.0
    %1039 = vmatpush1.msra.mxu0 0.0
    %1040 = vmatprep.subr.mxu0 0.0
    %1041 = vmatpush1.msra.mxu0 0.0
    %1042 = vmatprep.subr.mxu0 0.0
    %1043 = vmatpush1.msra.mxu0 0.0
    %1044 = vmatprep.subr.mxu0 0.0
    %1045 = vmatpush1.msra.mxu0 0.0
    %1046 = vmatprep.subr.mxu0 0.0
    %1047 = vmatpush1.msra.mxu0 0.0
    %1048 = vmatprep.subr.mxu0 0.0
    %1049 = vmatpush1.msra.mxu0 0.0
    %1050 = vmatprep.subr.mxu0 0.0
    %1051 = vmatpush1.msra.mxu0 0.0
    %1052 = vmatprep.subr.mxu0 0.0
    %1053 = vmatpush1.msra.mxu0 0.0
    %1054 = vmatprep.subr.mxu0 0.0
    %1055 = vmatpush1.msra.mxu0 0.0
    %1056 = vmatprep.subr.mxu0 0.0
    %1057 = vmatpush1.msra.mxu0 0.0
    %1058 = vmatprep.subr.mxu0 0.0
    %1059 = vmatpush1.msra.mxu0 0.0
    %1060 = vmatprep.subr.mxu0 0.0
    %1061 = vmatpush1.msra.mxu0 0.0
    %1062 = vmatprep.subr.mxu0 0.0
    %1063 = vmatpush1.msra.mxu0 0.0
    %1064 = vmatprep.subr.mxu0 0.0
    %1065 = vmatpush1.msra.mxu0 0.0
    %1066 = vmatprep.subr.mxu0 0.0
    %1067 = vmatpush1.msra.mxu0 0.0
    %1068 = vmatprep.mubr.f32.mxu0 0.0
    %1069 = vmatmul.mubr.f32.gmra.mrb[0].mxu0 %v286
    %v1070 = vpop.f32.mrb[0].mxu0
    %v1071 = vadd.f32 0.0, %v1070
    %v1072 = vpop.f32.mrb[0].mxu0
    %1073 = vmatprep.mubr.f32.mxu0 0.0
    %1074 = vmatmul.mubr.f32.gmra.mrb[0].mxu0 %v387
    %v1075 = vpop.f32.mrb[0].mxu0
    %v1076 = vadd.f32 0.0, %v1075
    %v1077 = vpop.f32.mrb[0].mxu0
    %1078 = vmatprep.mubr.f32.mxu0 0.0
    %1079 = vmatmul.mubr.f32.gmra.mrb[0].mxu0 %v488
    %v1080 = vpop.f32.mrb[0].mxu0
    %v1081 = vadd.f32 0.0, %v1080
    %v1082 = vpop.f32.mrb[0].mxu0
    %1083 = vmatprep.mubr.f32.mxu0 0.0
    %1084 = vmatmul.mubr.f32.gmra.mrb[0].mxu0 %v589
    %v1085 = vpop.f32.mrb[0].mxu0
    %v1086 = vadd.f32 0.0, %v1085
    %v1087 = vpop.f32.mrb[0].mxu0
    %1088 = vmatprep.mubr.f32.mxu0 0.0
    %1089 = vmatmul.mubr.f32.gmra.mrb[0].mxu0 %v690
    %v1090 = vpop.f32.mrb[0].mxu0
    %v1091 = vadd.f32 0.0, %v1090
    %v1092 = vpop.f32.mrb[0].mxu0
    %1093 = vmatprep.mubr.f32.mxu0 0.0
    %1094 = vmatmul.mubr.f32.gmra.mrb[0].mxu0 %v791
    %v1095 = vpop.f32.mrb[0].mxu0
    %v1096 = vadd.f32 0.0, %v1095
    %v1097 = vpop.f32.mrb[0].mxu0
    %1098 = vmatprep.mubr.f32.mxu0 0.0
    %1099 = vmatmul.mubr.f32.gmra.mrb[0].mxu0 %v892
    %v1100 = vpop.f32.mrb[0].mxu0
    %v1101 = vadd.f32 0.0, %v1100
    %v1102 = vpop.f32.mrb[0].mxu0
    %1103 = vmatprep.mubr.f32.mxu0 0.0
    %1104 = vmatmul.mubr.f32.gmra.mrb[0].mxu0 %v1000
    %v1105 = vpop.f32.mrb[0].mxu0
    %v1106 = vadd.f32 0.0, %v1105
    %v1107 = vpop.f32.mrb[0].mxu0
    %1108 = vmatprep.mubr.f32.mxu0 0.0
    %1109 = vmatmul.mubr.f32.gmra.mrb[0].mxu0 %v1002
    %v1110 = vpop.f32.mrb[0].mxu0
    %v1111 = vadd.f32 0.0, %v1110
    %v1112 = vpop.f32.mrb[0].mxu0
    %1113 = vdwg.mxu0
    %v1114 = vld [vmem:[%s5] sm:$0x1]
    %v1116 = vlaneseq
    %v1117 = vshrl.u32 %v1116, 7
    %v1118 = vsub.s32 0, %v1117
    %v1119 = vrot.slane %v1114, %v1118
    %v1121 = vadd.f32 %v1071, %v1119
    %v1122 = vadd.f32 %v1076, %v1119
    %v1123 = vadd.f32 %v1081, %v1119
    %v1124 = vadd.f32 %v1086, %v1119
    %v1125 = vadd.f32 %v1091, %v1119
    %v1126 = vadd.f32 %v1096, %v1119
    %v1127 = vadd.f32 %v1101, %v1119
    %v1128 = vadd.f32 %v1106, %v1119
    %vm1129 = vcmask 64512
    %1130 = vst.msk [vmem:[%s8] sm:$0xff] %vm1129, %v1121
    %1131 = vst.msk [vmem:[%s8 + $0x8] sm:$0xff] %vm1129, %v1122
    %1132 = vst.msk [vmem:[%s8 + $0x10] sm:$0xff] %vm1129, %v1123
    %1133 = vst.msk [vmem:[%s8 + $0x18] sm:$0xff] %vm1129, %v1124
    %1134 = vst.msk [vmem:[%s8 + $0x20] sm:$0xff] %vm1129, %v1125
    %1135 = vst.msk [vmem:[%s8 + $0x28] sm:$0xff] %vm1129, %v1126
    %1136 = vst.msk [vmem:[%s8 + $0x30] sm:$0xff] %vm1129, %v1127
    %1137 = vst.msk [vmem:[%s8 + $0x38] sm:$0xff] %vm1129, %v1128
    %v1138 = vld [vmem:[%s6] sm:$0x1]
    %v1140 = vlaneseq
    %v1141 = vshrl.u32 %v1140, 7
    %v1142 = vsub.s32 0, %v1141
    %v1143 = vrot.slane %v1138, %v1142
    %1144 = vrot.lane.b32.xlu0 %v1143, 8
    %v1145 = vpop.permute.xlu0 %1144
    %v1147 = vadd.f32 %v1111, %v1145
    %v1148 = vxor.u32 %v1147, 2147483648
    %v1149 = vmul.f32 %v1148, 1.442695
    %v1150 = vpow.pop %v1149
    %v1151 = vadd.f32 %v1150, 1.0
    %v1152 = vrcp.pop %v1151
    %v1153 = vmul.f32 1.0, %v1152
    %1155 = vrot.lane.b32.xlu0 %v1153, 120
    %v1156 = vpop.permute.xlu0 %1155
    %1158 = vst.msk [vmem:[#allocation2] sm:$0xff] %vm1129, %v1156
    // Predicated region
    $region30: #{tpu_custom_call.1} parent=1 // pred_check
      _
    $region31: #{tpu_custom_call.1} parent=1 // pred_check_branch
      %1160 = sbr.rel (0) target = $region33
    $region32: #{tpu_custom_call.1} parent=1 // pred_region
      %s1162 = ssub.s32 128, 128
      %1163 = vsyncadd [#allocation3], %s1162
      %s1165 = sshll.u32 [#allocation2], 4
      %s1166 = int_to_ptr.vmem [resolvable:$true] %s1165
      %1168 = dma.vmem_to_hbm [thread:$0]  %s1166, 128, %s7, [#allocation3]
    $region33: #{tpu_custom_call.1} parent=1 // pred_fallthru
      _
    // Predicated region
    $region34: #{tpu_custom_call.1} parent=1 // pred_check
      _
    $region35: #{tpu_custom_call.1} parent=1 // pred_check_branch
      %1170 = sbr.rel (0) target = $region37
    $region36: #{tpu_custom_call.1} parent=1 // pred_region
      _
    $region37: #{tpu_custom_call.1} parent=1 // pred_fallthru
      _
    // Predicated region
    $region38: #{tpu_custom_call.1} parent=1 // pred_check
      _
    $region39: #{tpu_custom_call.1} parent=1 // pred_check_branch
      %1172 = sbr.rel (0) target = $region41
    $region40: #{tpu_custom_call.1} parent=1 // pred_region
      %1173 = dma.done [#allocation3], 128
    $region41: #{tpu_custom_call.1} parent=1 // pred_fallthru
      _
    // Predicated region
    $region42: #{tpu_custom_call.1} parent=1 // pred_check
      _
    $region43: #{tpu_custom_call.1} parent=1 // pred_check_branch
      %1175 = sbr.rel (0) target = $region45
    $region44: #{tpu_custom_call.1} parent=1 // pred_region
      _
    $region45: #{tpu_custom_call.1} parent=1 // pred_fallthru
      _
    %1176 = vsyncpa [#allocation3], 1

</llo_original>
